<compile_context>
chip_gen: v5e
topology: v5e:2x2
jax: 0.10.0
libtpu: 0.0.40
codegen_flags: <defaults>
</compile_context>

<pallas_src>
import jax
import jax.numpy as jnp
from jax.experimental import pallas as pl
from jax.experimental.pallas import tpu as pltpu


def _round_up(x, m):
    return ((x + m - 1) // m) * m


def _cdiv(a, b):
    return -(-a // b)


def _num_tensorcores_per_chip():
    # Only v7x exposes 2 TensorCores per chip that a "parallel" grid axis is
    # sharded across; v5e/v6e are single-TC (do NOT shrink tiles there).
    try:
        kind = jax.devices()[0].device_kind.lower()
    except Exception:
        return 1
    return 2 if "v7" in kind else 1


def _pick_tile_b(B, tile_b, num_tc):
    """Pick a legal batch tile (rows per grid step)."""
    b8 = _round_up(max(B, 1), 8)
    tile_b = _round_up(max(8, int(tile_b)), 8)
    if b8 <= tile_b:
        # Whole batch fits one tile.
        if num_tc >= 2 and B >= 2 * 128:
            # v7x: keep >= 2 parallel grid steps so both TensorCores work.
            return _round_up(_cdiv(B, num_tc), 128)
        return b8
    # Multi-step grid: tiles must be 128-row multiples so the transposed
    # (action_dim, tile_b) output block is a legal, lane-dense store.
    return _round_up(tile_b, 128)


def actor_mu_kernel(x_ref, w1_ref, b1_ref, w2_ref, b2_ref, w3t_ref, b3t_ref,
                    mu_t_ref):
    # Layer 1: relu(x @ W1 + b1). MXU operands bf16, accumulate/elementwise f32.
    x = x_ref[...]
    if x.dtype != jnp.bfloat16:          # accept bf16 state directly
        x = x.astype(jnp.bfloat16)
    a = jnp.dot(x, w1_ref[...], preferred_element_type=jnp.float32) + b1_ref[...]
    a = jnp.maximum(a, 0.0)
    # Layer 2: relu(a @ W2 + b2)
    a = jnp.dot(a.astype(jnp.bfloat16), w2_ref[...],
                preferred_element_type=jnp.float32) + b2_ref[...]
    a = jnp.maximum(a, 0.0)
    # Head, computed transposed: z_T = W3t(action_dim, width) contracted with
    # a(tile_b, width) over the width axis -> (action_dim, tile_b).  The store
    # is lane-dense (tile_b lanes) instead of a 4/128 masked vst.msk.
    z_t = jax.lax.dot_general(
        w3t_ref[...], a.astype(jnp.bfloat16),
        dimension_numbers=(((1,), (1,)), ((), ())),
        preferred_element_type=jnp.float32) + b3t_ref[...]
    mu_t_ref[...] = jax.nn.sigmoid(z_t)


def gaussian_actor_mu_forward(state, w1, b1, w2, b2, w3, b3, *, tile_b=4096):
    """Fused forward pass, tiled over the batch dimension.

    Weights/biases stay VMEM-resident across all batch tiles (constant
    index_maps); only the (tile_b, state_dim) state tile and the transposed
    (action_dim, tile_b) output tile are streamed per grid step.
    """
    B, state_dim = state.shape
    net_width = w1.shape[1]
    action_dim = w3.shape[1]

    num_tc = _num_tensorcores_per_chip()
    tile_b = _pick_tile_b(B, tile_b, num_tc)
    b_pad = _round_up(B, tile_b)
    if b_pad != B:
        state = jnp.pad(state, ((0, b_pad - B), (0, 0)))

    # bf16 matmul operands (f32 accumulation in-kernel); biases stay f32.
    # Head weight/bias transposed for the lane-dense output store.
    w1b = w1.astype(jnp.bfloat16)                              # (state_dim, net_width)
    w2b = w2.astype(jnp.bfloat16)                              # (net_width, net_width)
    w3t = w3.T.astype(jnp.bfloat16)                            # (action_dim, net_width)
    b1f = b1.reshape(1, net_width).astype(jnp.float32)
    b2f = b2.reshape(1, net_width).astype(jnp.float32)
    b3t = b3.reshape(1, action_dim).T.astype(jnp.float32)      # (action_dim, 1)

    grid_steps = b_pad // tile_b

    # Weights / biases: full-array blocks pinned to block (0, 0) every step ->
    # DMA'd once, kept resident in VMEM.
    pinned = lambda a: pl.BlockSpec(a.shape, lambda i: (0,) * a.ndim)

    # State stream: deepen buffering when tiles are small and the grid is long
    # (hides exposed DMA latency, mostly a v5e concern); unnecessary at the
    # default large tile sizes.
    state_idx = lambda i: (i, 0)
    if tile_b < 1024 and grid_steps >= 3:
        try:
            state_spec = pl.BlockSpec((tile_b, state_dim), state_idx,
                                      pipeline_mode=pl.Buffered(3))
        except TypeError:
            state_spec = pl.BlockSpec((tile_b, state_dim), state_idx)
    else:
        state_spec = pl.BlockSpec((tile_b, state_dim), state_idx)

    flops = 2 * b_pad * (state_dim * net_width
                         + net_width * net_width
                         + net_width * action_dim)
    bytes_accessed = (
        state.size * state.dtype.itemsize                 # state stream
        + (w1b.size + w2b.size + w3t.size) * 2            # bf16 weights (once)
        + (b1f.size + b2f.size + b3t.size) * 4            # f32 biases (once)
        + b_pad * action_dim * 4                          # mu (f32)
    )

    mu_t = pl.pallas_call(
        actor_mu_kernel,
        out_shape=jax.ShapeDtypeStruct((action_dim, b_pad), jnp.float32),
        grid_spec=pltpu.PrefetchScalarGridSpec(
            num_scalar_prefetch=0,
            grid=(grid_steps,),
            in_specs=[
                state_spec,
                pinned(w1b), pinned(b1f),
                pinned(w2b), pinned(b2f),
                pinned(w3t), pinned(b3t),
            ],
            out_specs=pl.BlockSpec((action_dim, tile_b), lambda i: (0, i)),
        ),
        compiler_params=pltpu.CompilerParams(
            dimension_semantics=("parallel",),      # shards batch steps on v7x
            vmem_limit_bytes=32 * 1024 * 1024,      # ample on v5e/v6e/v7x
        ),
        cost_estimate=pl.CostEstimate(
            flops=flops,
            transcendentals=b_pad * action_dim,
            bytes_accessed=bytes_accessed,
        ),
    )(state, w1b, b1f, w2b, b2f, w3t, b3t)

    mu = mu_t.T                     # tiny (b_pad, action_dim) transpose in XLA
    return mu[:B] if b_pad != B else mu


def init_params(key, state_dim, net_width, action_dim, log_std=0.0):
    """nn.Linear-style init (U(-1/sqrt(fan_in), 1/sqrt(fan_in))), then
    mu_head.weight *= 0.1, mu_head.bias *= 0.0 as in the module's __init__.
    Weights returned in (in, out) layout."""
    ks = jax.random.split(key, 6)

    def linear(kw, kb, fan_in, fan_out):
        bound = 1.0 / jnp.sqrt(fan_in)
        w = jax.random.uniform(kw, (fan_in, fan_out), jnp.float32, -bound, bound)
        b = jax.random.uniform(kb, (1, fan_out), jnp.float32, -bound, bound)
        return w, b

    w1, b1 = linear(ks[0], ks[1], state_dim, net_width)
    w2, b2 = linear(ks[2], ks[3], net_width, net_width)
    w3, b3 = linear(ks[4], ks[5], net_width, action_dim)
    w3 = w3 * 0.1
    b3 = b3 * 0.0
    # action_log_std is a distribution parameter (get_dist), unused by forward()
    action_log_std = jnp.ones((1, action_dim), jnp.float32) * log_std
    return (w1, b1, w2, b2, w3, b3), action_log_std


def reference_forward(state, w1, b1, w2, b2, w3, b3):
    """Plain-JAX reference using the same bf16-operand / f32-accumulate recipe."""
    w1b, w2b, w3b = (w.astype(jnp.bfloat16) for w in (w1, w2, w3))
    a = jnp.dot(state.astype(jnp.bfloat16), w1b,
                preferred_element_type=jnp.float32) + b1
    a = jnp.maximum(a, 0.0)
    a = jnp.dot(a.astype(jnp.bfloat16), w2b,
                preferred_element_type=jnp.float32) + b2
    a = jnp.maximum(a, 0.0)
    z = jnp.dot(a.astype(jnp.bfloat16), w3b,
                preferred_element_type=jnp.float32) + b3
    return jax.nn.sigmoid(z)


if __name__ == "__main__":
    key = jax.random.PRNGKey(0)
    k_param, k_state = jax.random.split(key)

    batch, state_dim, net_width, action_dim = 2, 16, 32, 4
    (w1, b1, w2, b2, w3, b3), _log_std = init_params(
        k_param, state_dim, net_width, action_dim, log_std=0.0)

    state = jax.random.normal(k_state, (batch, state_dim), jnp.float32)

    mu = gaussian_actor_mu_forward(state, w1, b1, w2, b2, w3, b3)
    mu = jax.block_until_ready(mu)

    # sanity check against plain-JAX reference (same bf16 matmul recipe)
    ref = reference_forward(state, w1, b1, w2, b2, w3, b3)
    assert mu.shape == (batch, action_dim)
    assert jnp.allclose(mu, ref, atol=2e-2, rtol=2e-2)

    # TODO(synk): get_dist (Normal(mu, exp(action_log_std))) is distribution
    # construction outside forward(); not implemented as a kernel.
    print("KERNEL_OK")
</pallas_src>

<mosaic_0001>
module attributes {stable_mosaic.version = 11 : i64} {
  func.func @actor_mu_kernel(%arg0: i32, %arg1: memref<8x16xf32, #tpu.memory_space<vmem>>, %arg2: memref<16x32xbf16, #tpu.memory_space<vmem>>, %arg3: memref<1x32xf32, #tpu.memory_space<vmem>>, %arg4: memref<32x32xbf16, #tpu.memory_space<vmem>>, %arg5: memref<1x32xf32, #tpu.memory_space<vmem>>, %arg6: memref<4x32xbf16, #tpu.memory_space<vmem>>, %arg7: memref<4x1xf32, #tpu.memory_space<vmem>>, %arg8: memref<4x8xf32, #tpu.memory_space<vmem>>) attributes {dimension_semantics = [#tpu.dimension_semantics<parallel>], iteration_bounds = array<i64: 1>, scalar_prefetch = 0 : i64, scratch_operands = 0 : i64, tpu.core_type = #tpu.core_type<tc>, window_params = [{transform_indices = @transform_0, window_bounds = array<i64: 8, 16>}, {pipeline_mode = #tpu.pipeline_mode<synchronous>, transform_indices = @transform_1, window_bounds = array<i64: 16, 32>}, {pipeline_mode = #tpu.pipeline_mode<synchronous>, transform_indices = @transform_2, window_bounds = array<i64: 1, 32>}, {pipeline_mode = #tpu.pipeline_mode<synchronous>, transform_indices = @transform_3, window_bounds = array<i64: 32, 32>}, {pipeline_mode = #tpu.pipeline_mode<synchronous>, transform_indices = @transform_4, window_bounds = array<i64: 1, 32>}, {pipeline_mode = #tpu.pipeline_mode<synchronous>, transform_indices = @transform_5, window_bounds = array<i64: 4, 32>}, {pipeline_mode = #tpu.pipeline_mode<synchronous>, transform_indices = @transform_6, window_bounds = array<i64: 4, 1>}, {transform_indices = @transform_7, window_bounds = array<i64: 4, 8>}]} {
    %c0 = arith.constant 0 : index
    %c0_0 = arith.constant 0 : index
    %0 = vector.load %arg1[%c0, %c0_0] : memref<8x16xf32, #tpu.memory_space<vmem>>, vector<8x16xf32>
    %1 = arith.truncf %0 : vector<8x16xf32> to vector<8x16xbf16>
    %c0_1 = arith.constant 0 : index
    %c0_2 = arith.constant 0 : index
    %2 = vector.load %arg2[%c0_1, %c0_2] : memref<16x32xbf16, #tpu.memory_space<vmem>>, vector<16x32xbf16>
    %cst = arith.constant dense<0.000000e+00> : vector<8x32xf32>
    %3 = tpu.matmul %1, %2, %cst {dimension_numbers = #tpu.dot_dimension_numbers<[1], [0], [0], [1], [0, 0, 1, 1], [], []>} : vector<8x16xbf16>, vector<16x32xbf16>, vector<8x32xf32> -> vector<8x32xf32>
    %c0_3 = arith.constant 0 : index
    %c0_4 = arith.constant 0 : index
    %4 = vector.load %arg3[%c0_3, %c0_4] : memref<1x32xf32, #tpu.memory_space<vmem>>, vector<1x32xf32>
    %5 = vector.broadcast %4 : vector<1x32xf32> to vector<8x32xf32>
    %6 = arith.addf %3, %5 : vector<8x32xf32>
    %cst_5 = arith.constant 0.000000e+00 : f32
    %7 = vector.broadcast %cst_5 : f32 to vector<8x32xf32>
    %8 = arith.maximumf %6, %7 : vector<8x32xf32>
    %9 = arith.truncf %8 : vector<8x32xf32> to vector<8x32xbf16>
    %c0_6 = arith.constant 0 : index
    %c0_7 = arith.constant 0 : index
    %10 = vector.load %arg4[%c0_6, %c0_7] : memref<32x32xbf16, #tpu.memory_space<vmem>>, vector<32x32xbf16>
    %cst_8 = arith.constant dense<0.000000e+00> : vector<8x32xf32>
    %11 = tpu.matmul %9, %10, %cst_8 {dimension_numbers = #tpu.dot_dimension_numbers<[1], [0], [0], [1], [0, 0, 1, 1], [], []>} : vector<8x32xbf16>, vector<32x32xbf16>, vector<8x32xf32> -> vector<8x32xf32>
    %c0_9 = arith.constant 0 : index
    %c0_10 = arith.constant 0 : index
    %12 = vector.load %arg5[%c0_9, %c0_10] : memref<1x32xf32, #tpu.memory_space<vmem>>, vector<1x32xf32>
    %13 = vector.broadcast %12 : vector<1x32xf32> to vector<8x32xf32>
    %14 = arith.addf %11, %13 : vector<8x32xf32>
    %cst_11 = arith.constant 0.000000e+00 : f32
    %15 = vector.broadcast %cst_11 : f32 to vector<8x32xf32>
    %16 = arith.maximumf %14, %15 : vector<8x32xf32>
    %c0_12 = arith.constant 0 : index
    %c0_13 = arith.constant 0 : index
    %17 = vector.load %arg6[%c0_12, %c0_13] : memref<4x32xbf16, #tpu.memory_space<vmem>>, vector<4x32xbf16>
    %18 = arith.truncf %16 : vector<8x32xf32> to vector<8x32xbf16>
    %cst_14 = arith.constant dense<0.000000e+00> : vector<4x8xf32>
    %19 = tpu.matmul %17, %18, %cst_14 {dimension_numbers = #tpu.dot_dimension_numbers<[1], [1], [0], [0], [0, 0, 1, 0], [], []>} : vector<4x32xbf16>, vector<8x32xbf16>, vector<4x8xf32> -> vector<4x8xf32>
    %c0_15 = arith.constant 0 : index
    %c0_16 = arith.constant 0 : index
    %20 = vector.load %arg7[%c0_15, %c0_16] : memref<4x1xf32, #tpu.memory_space<vmem>>, vector<4x1xf32>
    %21 = vector.broadcast %20 : vector<4x1xf32> to vector<4x8xf32>
    %22 = arith.addf %19, %21 : vector<4x8xf32>
    %23 = arith.negf %22 : vector<4x8xf32>
    %24 = math.exp %23 : vector<4x8xf32>
    %cst_17 = arith.constant 1.000000e+00 : f32
    %25 = vector.broadcast %cst_17 : f32 to vector<4x8xf32>
    %26 = arith.addf %25, %24 : vector<4x8xf32>
    %27 = arith.divf %25, %26 : vector<4x8xf32>
    %c0_18 = arith.constant 0 : index
    %c0_19 = arith.constant 0 : index
    %28 = vector.load %arg8[%c0_18, %c0_19] : memref<4x8xf32, #tpu.memory_space<vmem>>, vector<4x8xf32>
    tpu.vector_store %arg8[%c0_18, %c0_19], %27 {strides = array<i32>} : memref<4x8xf32, #tpu.memory_space<vmem>>, vector<4x8xf32>,
    return
  }
  func.func @transform_0(%arg0: i32) -> (i32, i32) {
    %c0_i32 = arith.constant 0 : i32
    %c0_i32_0 = arith.constant 0 : i32
    return %arg0, %c0_i32 : i32, i32
  }
  func.func @transform_1(%arg0: i32) -> (i32, i32) {
    %c0_i32 = arith.constant 0 : i32
    %c0_i32_0 = arith.constant 0 : i32
    %c0_i32_1 = arith.constant 0 : i32
    return %c0_i32, %c0_i32_0 : i32, i32
  }
  func.func @transform_2(%arg0: i32) -> (i32, i32) {
    %c0_i32 = arith.constant 0 : i32
    %c0_i32_0 = arith.constant 0 : i32
    %c0_i32_1 = arith.constant 0 : i32
    return %c0_i32, %c0_i32_0 : i32, i32
  }
  func.func @transform_3(%arg0: i32) -> (i32, i32) {
    %c0_i32 = arith.constant 0 : i32
    %c0_i32_0 = arith.constant 0 : i32
    %c0_i32_1 = arith.constant 0 : i32
    return %c0_i32, %c0_i32_0 : i32, i32
  }
  func.func @transform_4(%arg0: i32) -> (i32, i32) {
    %c0_i32 = arith.constant 0 : i32
    %c0_i32_0 = arith.constant 0 : i32
    %c0_i32_1 = arith.constant 0 : i32
    return %c0_i32, %c0_i32_0 : i32, i32
  }
  func.func @transform_5(%arg0: i32) -> (i32, i32) {
    %c0_i32 = arith.constant 0 : i32
    %c0_i32_0 = arith.constant 0 : i32
    %c0_i32_1 = arith.constant 0 : i32
    return %c0_i32, %c0_i32_0 : i32, i32
  }
  func.func @transform_6(%arg0: i32) -> (i32, i32) {
    %c0_i32 = arith.constant 0 : i32
    %c0_i32_0 = arith.constant 0 : i32
    %c0_i32_1 = arith.constant 0 : i32
    return %c0_i32, %c0_i32_0 : i32, i32
  }
  func.func @transform_7(%arg0: i32) -> (i32, i32) {
    %c0_i32 = arith.constant 0 : i32
    %c0_i32_0 = arith.constant 0 : i32
    return %c0_i32, %arg0 : i32, i32
  }
}

</mosaic_0001>

<llo_original>
// kernel: tpu_custom_call.1
$region0: #{tpu_custom_call.1}
  #allocation0 [shape = 'u32[]', space=smem, size = 0x4, offset = 0x4, fixed_abs, tag = 'smem constant byte address 0x4 - core index']
  #allocation1 [shape = 'u32[72,128]{1,0:T(1,128)}', space=vmem, size = 0x9000, scoped, tag = 'internal scratch']
  %s0 = inlined_call_operand.hbm [shape: f32[8,16], index: 0, kind: input, shape index: {}]
  %s1 = inlined_call_operand.hbm [shape: bf16[16,32], index: 1, kind: input, shape index: {}]
  %s2 = inlined_call_operand.vmem [shape: f32[1,32], index: 2, kind: input, shape index: {}]
  %s3 = inlined_call_operand.hbm [shape: bf16[32,32], index: 3, kind: input, shape index: {}]
  %s4 = inlined_call_operand.vmem [shape: f32[1,32], index: 4, kind: input, shape index: {}]
  %s5 = inlined_call_operand.vmem [shape: bf16[4,32], index: 5, kind: input, shape index: {}]
  %s6 = inlined_call_operand.vmem [shape: f32[4,1], index: 6, kind: input, shape index: {}]
  %s7 = inlined_call_operand.hbm [shape: f32[4,8], index: 7, kind: output, shape index: {}]
  %s8 = sld [smem:[#allocation0]]
  $region50: #{tpu_custom_call.1} parent=0
    _
  %s10 = ssub.s32 1, %s8
  %s11 = scalar_select 0, %s10, %s8
  $region1: #{tpu_custom_call.1} parent=0
    #allocation2 [shape = 'u8[4096]{0}', space=vmem, size = 0x1000, scoped, tag = 'input window, operand 0, single buffered']
    #allocation3 [shape = 's32[1]{0}', space=sflag, size = 0x4, scoped, tag = 'scoped memory for tpu_custom_call.1']
    #allocation4 [shape = 's32[1]{0}', space=sflag, size = 0x4, scoped, tag = 'scoped memory for tpu_custom_call.1']
    #allocation5 [shape = 'u8[4096]{0}', space=vmem, size = 0x1000, scoped, tag = 'input window, operand 1, single buffered']
    #allocation6 [shape = 's32[1]{0}', space=sflag, size = 0x4, scoped, tag = 'scoped memory for tpu_custom_call.1']
    #allocation7 [shape = 'u8[8192]{0}', space=vmem, size = 0x2000, scoped, tag = 'input window, operand 3, single buffered']
    #allocation8 [shape = 'u8[2048]{0}', space=vmem, size = 0x800, scoped, tag = 'output window, operand 0, single buffered']
    %12 = vsyncpa [#allocation3], 0
    %13 = vsyncpa [#allocation6], 0
    %14 = vsyncpa [#allocation4], 0
    // Predicated region
    $region2: #{tpu_custom_call.1} parent=1 // pred_check
      _
    $region3: #{tpu_custom_call.1} parent=1 // pred_check_branch
      %16 = sbr.rel (0) target = $region5
    $region4: #{tpu_custom_call.1} parent=1 // pred_region
      %18 = vsyncadd [#allocation3], 0
      %s20 = sshll.u32 %s0, 4
      %s21 = int_to_ptr.hbm [resolvable:$true] %s20
      %s22 = sshll.u32 [#allocation2], 4
      %s23 = int_to_ptr.vmem [resolvable:$true] %s22
      %25 = dma.hbm_to_vmem [thread:$0]  %s21, 128, %s23, [#allocation3]
    $region5: #{tpu_custom_call.1} parent=1 // pred_fallthru
      _
    // Predicated region
    $region6: #{tpu_custom_call.1} parent=1 // pred_check
      _
    $region7: #{tpu_custom_call.1} parent=1 // pred_check_branch
      %27 = sbr.rel (0) target = $region9
    $region8: #{tpu_custom_call.1} parent=1 // pred_region
      %29 = vsyncadd [#allocation6], 0
      %s30 = sshll.u32 %s1, 4
      %s31 = int_to_ptr.hbm [resolvable:$true] %s30
      %s32 = sshll.u32 [#allocation5], 4
      %s33 = int_to_ptr.vmem [resolvable:$true] %s32
      %38 = dma.hbm_to_vmem [thread:$0]  %s31, 128, %s33, [#allocation6], 64, 64, 4
    $region9: #{tpu_custom_call.1} parent=1 // pred_fallthru
      _
    // Predicated region
    $region10: #{tpu_custom_call.1} parent=1 // pred_check
      _
    $region11: #{tpu_custom_call.1} parent=1 // pred_check_branch
      %40 = sbr.rel (0) target = $region13
    $region12: #{tpu_custom_call.1} parent=1 // pred_region
      _
    $region13: #{tpu_custom_call.1} parent=1 // pred_fallthru
      _
    // Predicated region
    $region14: #{tpu_custom_call.1} parent=1 // pred_check
      _
    $region15: #{tpu_custom_call.1} parent=1 // pred_check_branch
      %42 = sbr.rel (0) target = $region17
    $region16: #{tpu_custom_call.1} parent=1 // pred_region
      %44 = vsyncadd [#allocation6], 0
      %s45 = sshll.u32 %s3, 4
      %s46 = int_to_ptr.hbm [resolvable:$true] %s45
      %s47 = sshll.u32 [#allocation7], 4
      %s48 = int_to_ptr.vmem [resolvable:$true] %s47
      %53 = dma.hbm_to_vmem [thread:$0]  %s46, 256, %s48, [#allocation6], 64, 64, 4
    $region17: #{tpu_custom_call.1} parent=1 // pred_fallthru
      _
    // Predicated region
    $region18: #{tpu_custom_call.1} parent=1 // pred_check
      _
    $region19: #{tpu_custom_call.1} parent=1 // pred_check_branch
      %55 = sbr.rel (0) target = $region21
    $region20: #{tpu_custom_call.1} parent=1 // pred_region
      _
    $region21: #{tpu_custom_call.1} parent=1 // pred_fallthru
      _
    // Predicated region
    $region22: #{tpu_custom_call.1} parent=1 // pred_check
      _
    $region23: #{tpu_custom_call.1} parent=1 // pred_check_branch
      %57 = sbr.rel (0) target = $region25
    $region24: #{tpu_custom_call.1} parent=1 // pred_region
      _
    $region25: #{tpu_custom_call.1} parent=1 // pred_fallthru
      _
    // Predicated region
    $region26: #{tpu_custom_call.1} parent=1 // pred_check
      _
    $region27: #{tpu_custom_call.1} parent=1 // pred_check_branch
      %59 = sbr.rel (0) target = $region29
    $region28: #{tpu_custom_call.1} parent=1 // pred_region
      _
    $region29: #{tpu_custom_call.1} parent=1 // pred_fallthru
      _
    // Predicated region
    $region30: #{tpu_custom_call.1} parent=1 // pred_check
      _
    $region31: #{tpu_custom_call.1} parent=1 // pred_check_branch
      %61 = sbr.rel (0) target = $region33
    $region32: #{tpu_custom_call.1} parent=1 // pred_region
      %63 = dma.done [#allocation3], 128
    $region33: #{tpu_custom_call.1} parent=1 // pred_fallthru
      _
    // Predicated region
    $region34: #{tpu_custom_call.1} parent=1 // pred_check
      _
    $region35: #{tpu_custom_call.1} parent=1 // pred_check_branch
      %65 = sbr.rel (0) target = $region37
    $region36: #{tpu_custom_call.1} parent=1 // pred_region
      %67 = dma.done [#allocation6], 128
    $region37: #{tpu_custom_call.1} parent=1 // pred_fallthru
      _
    // Predicated region
    $region38: #{tpu_custom_call.1} parent=1 // pred_check
      _
    $region39: #{tpu_custom_call.1} parent=1 // pred_check_branch
      %69 = sbr.rel (0) target = $region41
    $region40: #{tpu_custom_call.1} parent=1 // pred_region
      %71 = dma.done [#allocation6], 256
    $region41: #{tpu_custom_call.1} parent=1 // pred_fallthru
      _
    %v73 = vld [vmem:[#allocation2] sm:$0xff]
    %v74 = vpack.c.bf16 %v73, %v73
    %v75 = vld [vmem:[#allocation5] sm:$0xf]
    %v76 = vld [vmem:[#allocation5 + $0x4] sm:$0xf]
    %v77 = vld [vmem:[%s2] sm:$0x1]
    %v79 = vperm.slane %v77, 0
    %v83 = vunpack.c.l.b16 %v75
    %v84 = vunpack.c.l.b16 %v76
    %v85 = vpack.c.b16 %v84, %v83
    %vm87 = vcmask 130048
    %v89 = vsel %vm87, %v74, 0
    %91 = vmatpush.bf16.msra.mxu0 0
    %92 = vmatpush.bf16.msra.mxu0 0
    %93 = vmatpush.bf16.msra.mxu0 0
    %94 = vmatpush.bf16.msra.mxu0 0
    %95 = vmatpush.bf16.msra.mxu0 0
    %96 = vmatpush.bf16.msra.mxu0 0
    %97 = vmatpush.bf16.msra.mxu0 0
    %98 = vmatpush.bf16.msra.mxu0 %v85
    %99 = vmatmul.bf16.gmra.mxu0 %v89
    %v100 = vpop.f32.mrf.mxu0
    %v101 = vadd.f32 %v79, %v100
    %v102 = vpop.f32.mrf.mxu0
    %103 = vdwg.mxu0
    %v104 = vmax.f32 %v101, 0.0
    %v105 = vpack.c.bf16 %v104, %v104
    %v106 = vld [vmem:[#allocation7] sm:$0xf]
    %v107 = vld [vmem:[#allocation7 + $0x4] sm:$0xf]
    %v108 = vld [vmem:[#allocation7 + $0x8] sm:$0xf]
    %v109 = vld [vmem:[#allocation7 + $0xc] sm:$0xf]
    %v110 = vld [vmem:[%s4] sm:$0x1]
    %v112 = vperm.slane %v110, 0
    %v118 = vunpack.c.l.b16 %v106
    %v119 = vunpack.c.l.b16 %v107
    %v120 = vunpack.c.l.b16 %v108
    %v121 = vunpack.c.l.b16 %v109
    %v122 = vpack.c.b16 %v119, %v118
    %v123 = vpack.c.b16 %v121, %v120
    %vm126 = vcmask 261120
    %v128 = vsel %vm126, %v105, 0
    %130 = vmatpush.bf16.msra.mxu0 0
    %131 = vmatpush.bf16.msra.mxu0 0
    %132 = vmatpush.bf16.msra.mxu0 0
    %133 = vmatpush.bf16.msra.mxu0 0
    %134 = vmatpush.bf16.msra.mxu0 0
    %135 = vmatpush.bf16.msra.mxu0 0
    %136 = vmatpush.bf16.msra.mxu0 %v123
    %137 = vmatpush.bf16.msra.mxu0 %v122
    %138 = vmatmul.bf16.gmra.mxu0 %v128
    %v139 = vpop.f32.mrf.mxu0
    %v140 = vadd.f32 %v112, %v139
    %v141 = vpop.f32.mrf.mxu0
    %142 = vdwg.mxu0
    %v143 = vmax.f32 %v140, 0.0
    %v144 = vld [vmem:[%s5] sm:$0x3]
    %v145 = vpack.c.bf16 %v143, %v143
    %v146 = vld [vmem:[%s6] sm:$0xf]
    %148 = vset.pattern.permute.xlu0 0
    %149 = vperm.xlu0 %148, %v146
    %v150 = vpop.permute.xlu0 %149
    %v153 = vsel %vm126, %v144, 0
    %v156 = vsel %vm126, %v145, 0
    %158 = vmatpush.bf16.xpose.msra.mxu0 0
    %159 = vmatpush.bf16.xpose.msra.mxu0 0
    %160 = vmatpush.bf16.xpose.msra.mxu0 0
    %161 = vmatpush.bf16.xpose.msra.mxu0 0
    %162 = vmatpush.bf16.xpose.msra.mxu0 0
    %163 = vmatpush.bf16.xpose.msra.mxu0 0
    %164 = vmatpush.bf16.xpose.msra.mxu0 0
    %165 = vmatpush.bf16.xpose.msra.mxu0 %v156
    %166 = vmatmul.bf16.gmra.mxu0 %v153
    %v167 = vpop.f32.mrf.mxu0
    %v168 = vadd.f32 %v150, %v167
    %v169 = vpop.f32.mrf.mxu0
    %170 = vdwg.mxu0
    %v171 = vxor.u32 %v168, 2147483648
    %v172 = vmul.f32 %v171, 1.442695
    %v173 = vpow.pop %v172
    %v174 = vadd.f32 %v173, 1.0
    %v175 = vrcp.pop %v174
    %v176 = vmul.f32 %v174, %v175
    %v177 = vsub.f32 1.0, %v176
    %v178 = vmul.f32 %v175, %v177
    %v179 = vadd.f32 %v175, %v178
    %vm180 = vweird.f32 %v174
    %vm181 = vweird.f32 %v175
    %vm182 = vmor %vm180, %vm181
    %v183 = vsel %vm182, %v175, %v179
    %v184 = vand.u32 2147483647, %v174
    %vm185 = vcmp.eq.f32.partialorder %v184, 8.507059e+37
    %v186 = vand.u32 %v174, 2147483648
    %v187 = vor.u32 1.1754944e-38, %v186
    %v188 = vsel %vm185, %v187, %v183
    %v189 = vmul.f32 1.0, %v188
    %vm190 = vcmask 60416
    %191 = vst.msk [vmem:[#allocation8] sm:$0xf] %vm190, %v189
    // Predicated region
    $region42: #{tpu_custom_call.1} parent=1 // pred_check
      _
    $region43: #{tpu_custom_call.1} parent=1 // pred_check_branch
      %193 = sbr.rel (0) target = $region45
    $region44: #{tpu_custom_call.1} parent=1 // pred_region
      %195 = vsyncadd [#allocation4], 0
      %s197 = sshll.u32 [#allocation8], 4
      %s198 = int_to_ptr.vmem [resolvable:$true] %s197
      %s199 = sshll.u32 %s7, 4
      %s200 = int_to_ptr.hbm [resolvable:$true] %s199
      %202 = dma.vmem_to_hbm [thread:$0]  %s198, 64, %s200, [#allocation4]
    $region45: #{tpu_custom_call.1} parent=1 // pred_fallthru
      _
    // Predicated region
    $region46: #{tpu_custom_call.1} parent=1 // pred_check
      _
    $region47: #{tpu_custom_call.1} parent=1 // pred_check_branch
      %204 = sbr.rel (0) target = $region49
    $region48: #{tpu_custom_call.1} parent=1 // pred_region
      %206 = dma.done [#allocation4], 64
    $region49: #{tpu_custom_call.1} parent=1 // pred_fallthru
      _
    %207 = vsyncpa [#allocation3], 1
    %208 = vsyncpa [#allocation6], 1
    %209 = vsyncpa [#allocation4], 1

</llo_original>
